<compile_context>
chip_gen: v5e
topology: v5e:2x2
jax: 0.10.0
libtpu: 0.0.40
codegen_flags: <defaults>
</compile_context>

<pallas_src>
import jax
import jax.numpy as jnp
from jax.experimental import pallas as pl
from jax.experimental.pallas import tpu as pltpu


def _fused_kernel(x_ref, wa_ref, w2_ref, bias_ref, out_ref):
    # x_ref:    (B*S, H)        batch-major rows: row = b*S + s
    # wa_ref:   (H, D1 + C*K)   packed [W_s1 | Wh_lane]  (head folded + reassociated)
    # w2_ref:   (D1, K)         attention second layer (b2 cancels under softmax)
    # bias_ref: (1, D1 + C)     packed [b_s1 | b_head]
    # out_ref:  (B, C)          logits
    B, C = out_ref.shape
    BS, _ = x_ref.shape
    S = BS // B
    D1, K = w2_ref.shape

    x = x_ref[...]
    bias = bias_ref[...]

    # One MXU matmul computes both the attention hidden pre-activation and the
    # reassociated head projection Y (== x @ Wh_lane), for every (b, s) row.
    hy = jnp.dot(x, wa_ref[...], preferred_element_type=jnp.float32)  # (B*S, D1+C*K)
    h1 = jnp.tanh(hy[:, :D1] + bias[:, :D1])                          # (B*S, D1)
    y = hy[:, D1:]                                                    # (B*S, C*K)  lanes = (class, hop)

    # Attention scores (bias b2 omitted: exact no-op under the seq-axis softmax).
    scores = jnp.dot(h1, w2_ref[...], preferred_element_type=jnp.float32)  # (B*S, K)

    # Per-batch sequence softmax + weighted column sums against Y.
    cs_rows = []
    for b in range(B):  # B is tiny and static -> unroll
        s_b = scores[b * S:(b + 1) * S, :]                    # (S, K) static sublane slice
        m = jnp.max(s_b, axis=0, keepdims=True)
        e = jnp.exp(s_b - m)
        # NOTE: exact divide kept for parity (pl.reciprocal(approx=True) shifts ~1e-3).
        p_b = e / jnp.sum(e, axis=0, keepdims=True)           # (S, K)
        p_rep = jnp.concatenate([p_b] * C, axis=1)            # (S, C*K)
        cs_rows.append(
            jnp.sum(p_rep * y[b * S:(b + 1) * S, :], axis=0, keepdims=True)  # (1, C*K)
        )
    cs = jnp.concatenate(cs_rows, axis=0)                     # (B, C*K)

    # Sum each K-lane group -> one logit per class; add folded head bias; single
    # full-block store (no masked per-row stores).
    # TODO(synk): nn.Dropout(p=0.2) is identity at inference; no stochastic mask.
    cols = [
        jnp.sum(cs[:, c * K:(c + 1) * K], axis=1, keepdims=True) for c in range(C)
    ]
    out_ref[...] = jnp.concatenate(cols, axis=1) + bias[:, D1:D1 + C]


def classifier_lstm_sentiment(fc_input, params):
    """fc_input: (S, B, H) float32 (pre-permute PyTorch layout). Returns (B, n_classes)."""
    S, B, H = fc_input.shape
    w1, b1 = params["w_s1"], params["b_s1"]
    w2 = params["w_s2"]  # b_s2 intentionally unused: cancels under the sequence softmax
    wp, bp = params["w_prev"], params["b_prev"]
    wo, bo = params["w_out"], params["b_out"]
    D1 = w1.shape[1]      # 100
    K = w2.shape[1]       # 10 hops
    C = wo.shape[1]
    hi = jax.lax.Precision.HIGHEST

    # Fold the two head Linears (exact; dropout is identity at inference, no
    # nonlinearity between them):
    #   logits = flat @ (w_prev @ w_out) + (b_prev @ w_out + b_out)
    w_head = jnp.dot(wp, wo, precision=hi)                    # (K*H, C)
    b_head = jnp.dot(bp, wo, precision=hi) + bo               # (1, C)
    # Reassociated head weight: (H, C*K) so Y = x @ wh_lane already carries the
    # (class, hop) structure along lanes -> no reshape / bmm / per-hop dots.
    wh_lane = w_head.reshape(K, H, C).transpose(1, 2, 0).reshape(H, C * K)

    # Operand packing: one weight slab sharing the x-contraction, one bias slab.
    wa = jnp.concatenate([w1, wh_lane], axis=1)               # (H, D1 + C*K)
    bias = jnp.concatenate([b1, b_head], axis=1)              # (1, D1 + C)

    # Tile-aligned batch-major 2-D input (row = b*S + s).
    x2d = jnp.transpose(fc_input, (1, 0, 2)).reshape(B * S, H)

    flops = 2 * B * S * (H * (D1 + K * C) + D1 * K)
    transcendentals = B * S * (D1 + K)
    bytes_accessed = 4 * (B * S * H + H * (D1 + K * C) + D1 * K + (D1 + C) + B * C)

    vmem = pl.BlockSpec(memory_space=pltpu.MemorySpace.VMEM)
    return pl.pallas_call(
        _fused_kernel,
        out_shape=jax.ShapeDtypeStruct((B, C), jnp.float32),
        in_specs=[vmem] * 4,
        out_specs=vmem,
        cost_estimate=pl.CostEstimate(
            flops=flops,
            transcendentals=transcendentals,
            bytes_accessed=bytes_accessed,
        ),
    )(x2d, wa, w2, bias)


def reference(fc_input, params):
    """Pure-JAX reference of the PyTorch forward (dropout in eval mode)."""
    hi = jax.lax.Precision.HIGHEST
    x = jnp.transpose(fc_input, (1, 0, 2))                               # (B, S, H)
    h1 = jnp.tanh(jnp.dot(x, params["w_s1"], precision=hi) + params["b_s1"])
    scores = jnp.dot(h1, params["w_s2"], precision=hi) + params["b_s2"]  # (B, S, 10)
    attn = jax.nn.softmax(jnp.transpose(scores, (0, 2, 1)), axis=2)      # (B, 10, S)
    mixed = jnp.einsum("bks,bsh->bkh", attn, x, precision=hi)            # (B, 10, H)
    flat = mixed.reshape(x.shape[0], -1)
    h = jnp.dot(flat, params["w_prev"], precision=hi) + params["b_prev"]
    return jnp.dot(h, params["w_out"], precision=hi) + params["b_out"]


if __name__ == "__main__":
    # Module hyperparams: hidden_d=32, hidden_d2=64, n_classes=3.
    S, B, H = 8, 2, 32
    D2, C = 64, 3

    key = jax.random.PRNGKey(0)
    ks = jax.random.split(key, 9)
    params = {
        # PyTorch Linear weights are (out, in); stored pre-transposed (in, out).
        "w_s1": 0.1 * jax.random.normal(ks[0], (H, 100), jnp.float32),
        "b_s1": 0.1 * jax.random.normal(ks[1], (1, 100), jnp.float32),
        "w_s2": 0.1 * jax.random.normal(ks[2], (100, 10), jnp.float32),
        "b_s2": 0.1 * jax.random.normal(ks[3], (1, 10), jnp.float32),
        "w_prev": 0.1 * jax.random.normal(ks[4], (10 * H, D2), jnp.float32),
        "b_prev": 0.1 * jax.random.normal(ks[5], (1, D2), jnp.float32),
        "w_out": 0.1 * jax.random.normal(ks[6], (D2, C), jnp.float32),
        "b_out": 0.1 * jax.random.normal(ks[7], (1, C), jnp.float32),
    }
    fc_input = jax.random.normal(ks[8], (S, B, H), jnp.float32)

    out = jax.block_until_ready(classifier_lstm_sentiment(fc_input, params))
    ref = reference(fc_input, params)

    assert out.shape == (B, C), out.shape
    assert jnp.allclose(out, ref, atol=1e-3, rtol=1e-3), (out, ref)
    print("KERNEL_OK")
</pallas_src>

<mosaic_0001>
module attributes {stable_mosaic.version = 11 : i64} {
  func.func @_fused_kernel(%arg0: memref<16x32xf32, #tpu.memory_space<vmem>>, %arg1: memref<32x130xf32, #tpu.memory_space<vmem>>, %arg2: memref<100x10xf32, #tpu.memory_space<vmem>>, %arg3: memref<1x103xf32, #tpu.memory_space<vmem>>, %arg4: memref<2x3xf32, #tpu.memory_space<vmem>>) attributes {dimension_semantics = [], scalar_prefetch = 0 : i64, scratch_operands = 0 : i64, tpu.core_type = #tpu.core_type<tc>} {
    %c0 = arith.constant 0 : index
    %c0_0 = arith.constant 0 : index
    %0 = vector.load %arg0[%c0, %c0_0] : memref<16x32xf32, #tpu.memory_space<vmem>>, vector<16x32xf32>
    %c0_1 = arith.constant 0 : index
    %c0_2 = arith.constant 0 : index
    %1 = vector.load %arg3[%c0_1, %c0_2] : memref<1x103xf32, #tpu.memory_space<vmem>>, vector<1x103xf32>
    %c0_3 = arith.constant 0 : index
    %c0_4 = arith.constant 0 : index
    %2 = vector.load %arg1[%c0_3, %c0_4] : memref<32x130xf32, #tpu.memory_space<vmem>>, vector<32x130xf32>
    %cst = arith.constant dense<0.000000e+00> : vector<16x130xf32>
    %3 = tpu.matmul %0, %2, %cst {dimension_numbers = #tpu.dot_dimension_numbers<[1], [0], [0], [1], [0, 0, 1, 1], [], []>} : vector<16x32xf32>, vector<32x130xf32>, vector<16x130xf32> -> vector<16x130xf32>
    %4 = vector.extract_strided_slice %3 {offsets = [0, 0], sizes = [16, 100], strides = [1, 1]} : vector<16x130xf32> to vector<16x100xf32>
    %5 = vector.extract_strided_slice %1 {offsets = [0, 0], sizes = [1, 100], strides = [1, 1]} : vector<1x103xf32> to vector<1x100xf32>
    %6 = vector.broadcast %5 : vector<1x100xf32> to vector<16x100xf32>
    %7 = arith.addf %4, %6 : vector<16x100xf32>
    %8 = math.tanh %7 : vector<16x100xf32>
    %9 = vector.extract_strided_slice %3 {offsets = [0, 100], sizes = [16, 30], strides = [1, 1]} : vector<16x130xf32> to vector<16x30xf32>
    %c0_5 = arith.constant 0 : index
    %c0_6 = arith.constant 0 : index
    %10 = vector.load %arg2[%c0_5, %c0_6] : memref<100x10xf32, #tpu.memory_space<vmem>>, vector<100x10xf32>
    %cst_7 = arith.constant dense<0.000000e+00> : vector<16x10xf32>
    %11 = tpu.matmul %8, %10, %cst_7 {dimension_numbers = #tpu.dot_dimension_numbers<[1], [0], [0], [1], [0, 0, 1, 1], [], []>} : vector<16x100xf32>, vector<100x10xf32>, vector<16x10xf32> -> vector<16x10xf32>
    %12 = vector.extract_strided_slice %11 {offsets = [0, 0], sizes = [8, 10], strides = [1, 1]} : vector<16x10xf32> to vector<8x10xf32>
    %cst_8 = arith.constant dense<0xFF800000> : vector<10xf32>
    %13 = vector.multi_reduction <maximumf>, %12, %cst_8 [0] : vector<8x10xf32> to vector<10xf32>
    %14 = vector.shape_cast %13 : vector<10xf32> to vector<1x10xf32>
    %15 = vector.broadcast %14 : vector<1x10xf32> to vector<8x10xf32>
    %16 = arith.subf %12, %15 : vector<8x10xf32>
    %17 = math.exp %16 : vector<8x10xf32>
    %cst_9 = arith.constant dense<0.000000e+00> : vector<10xf32>
    %18 = vector.multi_reduction <add>, %17, %cst_9 [0] : vector<8x10xf32> to vector<10xf32>
    %19 = vector.shape_cast %18 : vector<10xf32> to vector<1x10xf32>
    %20 = vector.broadcast %19 : vector<1x10xf32> to vector<8x10xf32>
    %21 = arith.divf %17, %20 : vector<8x10xf32>
    %22 = tpu.concatenate %21, %21, %21 in 1 : vector<8x10xf32>, vector<8x10xf32>, vector<8x10xf32> -> vector<8x30xf32>
    %23 = vector.extract_strided_slice %9 {offsets = [0, 0], sizes = [8, 30], strides = [1, 1]} : vector<16x30xf32> to vector<8x30xf32>
    %24 = arith.mulf %22, %23 : vector<8x30xf32>
    %cst_10 = arith.constant dense<0.000000e+00> : vector<30xf32>
    %25 = vector.multi_reduction <add>, %24, %cst_10 [0] : vector<8x30xf32> to vector<30xf32>
    %26 = vector.shape_cast %25 : vector<30xf32> to vector<1x30xf32>
    %27 = vector.extract_strided_slice %11 {offsets = [8, 0], sizes = [8, 10], strides = [1, 1]} : vector<16x10xf32> to vector<8x10xf32>
    %cst_11 = arith.constant dense<0xFF800000> : vector<10xf32>
    %28 = vector.multi_reduction <maximumf>, %27, %cst_11 [0] : vector<8x10xf32> to vector<10xf32>
    %29 = vector.shape_cast %28 : vector<10xf32> to vector<1x10xf32>
    %30 = vector.broadcast %29 : vector<1x10xf32> to vector<8x10xf32>
    %31 = arith.subf %27, %30 : vector<8x10xf32>
    %32 = math.exp %31 : vector<8x10xf32>
    %cst_12 = arith.constant dense<0.000000e+00> : vector<10xf32>
    %33 = vector.multi_reduction <add>, %32, %cst_12 [0] : vector<8x10xf32> to vector<10xf32>
    %34 = vector.shape_cast %33 : vector<10xf32> to vector<1x10xf32>
    %35 = vector.broadcast %34 : vector<1x10xf32> to vector<8x10xf32>
    %36 = arith.divf %32, %35 : vector<8x10xf32>
    %37 = tpu.concatenate %36, %36, %36 in 1 : vector<8x10xf32>, vector<8x10xf32>, vector<8x10xf32> -> vector<8x30xf32>
    %38 = vector.extract_strided_slice %9 {offsets = [8, 0], sizes = [8, 30], strides = [1, 1]} : vector<16x30xf32> to vector<8x30xf32>
    %39 = arith.mulf %37, %38 : vector<8x30xf32>
    %cst_13 = arith.constant dense<0.000000e+00> : vector<30xf32>
    %40 = vector.multi_reduction <add>, %39, %cst_13 [0] : vector<8x30xf32> to vector<30xf32>
    %41 = vector.shape_cast %40 : vector<30xf32> to vector<1x30xf32>
    %42 = tpu.concatenate %26, %41 in 0 : vector<1x30xf32>, vector<1x30xf32> -> vector<2x30xf32>
    %43 = vector.extract_strided_slice %42 {offsets = [0, 0], sizes = [2, 10], strides = [1, 1]} : vector<2x30xf32> to vector<2x10xf32>
    %cst_14 = arith.constant dense<0.000000e+00> : vector<2xf32>
    %44 = vector.multi_reduction <add>, %43, %cst_14 [1] : vector<2x10xf32> to vector<2xf32>
    %45 = vector.shape_cast %44 : vector<2xf32> to vector<2x1xf32>
    %46 = vector.extract_strided_slice %42 {offsets = [0, 10], sizes = [2, 10], strides = [1, 1]} : vector<2x30xf32> to vector<2x10xf32>
    %cst_15 = arith.constant dense<0.000000e+00> : vector<2xf32>
    %47 = vector.multi_reduction <add>, %46, %cst_15 [1] : vector<2x10xf32> to vector<2xf32>
    %48 = vector.shape_cast %47 : vector<2xf32> to vector<2x1xf32>
    %49 = vector.extract_strided_slice %42 {offsets = [0, 20], sizes = [2, 10], strides = [1, 1]} : vector<2x30xf32> to vector<2x10xf32>
    %cst_16 = arith.constant dense<0.000000e+00> : vector<2xf32>
    %50 = vector.multi_reduction <add>, %49, %cst_16 [1] : vector<2x10xf32> to vector<2xf32>
    %51 = vector.shape_cast %50 : vector<2xf32> to vector<2x1xf32>
    %52 = tpu.concatenate %45, %48, %51 in 1 : vector<2x1xf32>, vector<2x1xf32>, vector<2x1xf32> -> vector<2x3xf32>
    %53 = vector.extract_strided_slice %1 {offsets = [0, 100], sizes = [1, 3], strides = [1, 1]} : vector<1x103xf32> to vector<1x3xf32>
    %54 = vector.broadcast %53 : vector<1x3xf32> to vector<2x3xf32>
    %55 = arith.addf %52, %54 : vector<2x3xf32>
    %c0_17 = arith.constant 0 : index
    %c0_18 = arith.constant 0 : index
    %56 = vector.load %arg4[%c0_17, %c0_18] : memref<2x3xf32, #tpu.memory_space<vmem>>, vector<2x3xf32>
    tpu.vector_store %arg4[%c0_17, %c0_18], %55 {strides = array<i32>} : memref<2x3xf32, #tpu.memory_space<vmem>>, vector<2x3xf32>,
    return
  }
}

</mosaic_0001>

<llo_original>
// kernel: tpu_custom_call.1
$region0: #{tpu_custom_call.1}
  #allocation0 [shape = 'u32[]', space=smem, size = 0x4, offset = 0x4, fixed_abs, tag = 'smem constant byte address 0x4 - core index']
  #allocation1 [shape = 'u32[72,128]{1,0:T(1,128)}', space=vmem, size = 0x9000, scoped, tag = 'internal scratch']
  %s0 = inlined_call_operand.vmem [shape: f32[16,32], index: 0, kind: input, shape index: {}]
  %s1 = inlined_call_operand.vmem [shape: f32[32,130], index: 1, kind: input, shape index: {}]
  %s2 = inlined_call_operand.vmem [shape: f32[100,10], index: 2, kind: input, shape index: {}]
  %s3 = inlined_call_operand.vmem [shape: f32[1,103], index: 3, kind: input, shape index: {}]
  %s4 = inlined_call_operand.hbm [shape: f32[2,3], index: 4, kind: output, shape index: {}]
  %s5 = sld [smem:[#allocation0]]
  $region26: #{tpu_custom_call.1} parent=0
    _
  %s7 = ssub.s32 1, %s5
  %s8 = scalar_select 0, %s7, %s5
  $region1: #{tpu_custom_call.1} parent=0
    #allocation2 [shape = 'u8[1024]{0}', space=vmem, size = 0x400, scoped, tag = 'output window, operand 0, single buffered']
    #allocation3 [shape = 's32[1]{0}', space=sflag, size = 0x4, scoped, tag = 'scoped memory for tpu_custom_call.1']
    %9 = vsyncpa [#allocation3], 0
    // Predicated region
    $region2: #{tpu_custom_call.1} parent=1 // pred_check
      _
    $region3: #{tpu_custom_call.1} parent=1 // pred_check_branch
      %11 = sbr.rel (0) target = $region5
    $region4: #{tpu_custom_call.1} parent=1 // pred_region
      _
    $region5: #{tpu_custom_call.1} parent=1 // pred_fallthru
      _
    // Predicated region
    $region6: #{tpu_custom_call.1} parent=1 // pred_check
      _
    $region7: #{tpu_custom_call.1} parent=1 // pred_check_branch
      %13 = sbr.rel (0) target = $region9
    $region8: #{tpu_custom_call.1} parent=1 // pred_region
      _
    $region9: #{tpu_custom_call.1} parent=1 // pred_fallthru
      _
    // Predicated region
    $region10: #{tpu_custom_call.1} parent=1 // pred_check
      _
    $region11: #{tpu_custom_call.1} parent=1 // pred_check_branch
      %15 = sbr.rel (0) target = $region13
    $region12: #{tpu_custom_call.1} parent=1 // pred_region
      _
    $region13: #{tpu_custom_call.1} parent=1 // pred_fallthru
      _
    // Predicated region
    $region14: #{tpu_custom_call.1} parent=1 // pred_check
      _
    $region15: #{tpu_custom_call.1} parent=1 // pred_check_branch
      %17 = sbr.rel (0) target = $region17
    $region16: #{tpu_custom_call.1} parent=1 // pred_region
      _
    $region17: #{tpu_custom_call.1} parent=1 // pred_fallthru
      _
    %v18 = vld [vmem:[%s0] sm:$0xff]
    %v19 = vld [vmem:[%s0 + $0x8] sm:$0xff]
    %v20 = vld [vmem:[%s3] sm:$0x1]
    %v21 = vld [vmem:[%s1] sm:$0xff]
    %v22 = vld [vmem:[%s1 + $0x8] sm:$0xff]
    %v23 = vld [vmem:[%s1 + $0x10] sm:$0xff]
    %v24 = vld [vmem:[%s1 + $0x18] sm:$0xff]
    %v25 = vld [vmem:[%s1 + $0x20] sm:$0xff]
    %v26 = vld [vmem:[%s1 + $0x28] sm:$0xff]
    %v27 = vld [vmem:[%s1 + $0x30] sm:$0xff]
    %v28 = vld [vmem:[%s1 + $0x38] sm:$0xff]
    %vm29 = vcmask 261120
    %v31 = vsel %vm29, %v18, 0
    %v34 = vsel %vm29, %v19, 0
    %36 = vmatpush.msra.mxu0 0.0
    %37 = vmatpush.msra.mxu0 0.0
    %38 = vmatpush.msra.mxu0 0.0
    %39 = vmatpush.msra.mxu0 0.0
    %40 = vmatpush.msra.mxu0 0.0
    %41 = vmatpush.msra.mxu0 0.0
    %42 = vmatpush.msra.mxu0 0.0
    %43 = vmatpush.msra.mxu0 0.0
    %44 = vmatpush.msra.mxu0 0.0
    %45 = vmatpush.msra.mxu0 0.0
    %46 = vmatpush.msra.mxu0 0.0
    %47 = vmatpush.msra.mxu0 0.0
    %48 = vmatpush.msra.mxu0 %v27
    %49 = vmatpush.msra.mxu0 %v25
    %50 = vmatpush.msra.mxu0 %v23
    %51 = vmatpush.msra.mxu0 %v21
    %52 = vmatmul.f32.gmra.mxu0 %v31
    %v53 = vpop.f32.mrf.mxu0
    %v54 = vadd.f32 0.0, %v53
    %55 = vmatmul.f32.gmra.mxu0 %v34
    %v56 = vpop.f32.mrf.mxu0
    %v57 = vadd.f32 0.0, %v56
    %58 = vdwg.mxu0
    %59 = vmatpush.msra.mxu0 0.0
    %60 = vmatpush.msra.mxu0 0.0
    %61 = vmatpush.msra.mxu0 0.0
    %62 = vmatpush.msra.mxu0 0.0
    %63 = vmatpush.msra.mxu0 0.0
    %64 = vmatpush.msra.mxu0 0.0
    %65 = vmatpush.msra.mxu0 0.0
    %66 = vmatpush.msra.mxu0 0.0
    %67 = vmatpush.msra.mxu0 0.0
    %68 = vmatpush.msra.mxu0 0.0
    %69 = vmatpush.msra.mxu0 0.0
    %70 = vmatpush.msra.mxu0 0.0
    %71 = vmatpush.msra.mxu0 %v28
    %72 = vmatpush.msra.mxu0 %v26
    %73 = vmatpush.msra.mxu0 %v24
    %74 = vmatpush.msra.mxu0 %v22
    %75 = vmatmul.f32.gmra.mxu0 %v31
    %v76 = vpop.f32.mrf.mxu0
    %v77 = vadd.f32 0.0, %v76
    %78 = vmatmul.f32.gmra.mxu0 %v34
    %v79 = vpop.f32.mrf.mxu0
    %v80 = vadd.f32 0.0, %v79
    %81 = vdwg.mxu0
    %v83 = vperm.slane %v20, 0
    %v85 = vadd.f32 %v54, %v83
    %v86 = vadd.f32 %v57, %v83
    %v87 = vtanh.pop %v85
    %v88 = vtanh.pop %v86
    %v89 = vld [vmem:[%s2] sm:$0xff]
    %v90 = vld [vmem:[%s2 + $0x8] sm:$0xff]
    %v91 = vld [vmem:[%s2 + $0x10] sm:$0xff]
    %v92 = vld [vmem:[%s2 + $0x18] sm:$0xff]
    %v93 = vld [vmem:[%s2 + $0x20] sm:$0xff]
    %v94 = vld [vmem:[%s2 + $0x28] sm:$0xff]
    %v95 = vld [vmem:[%s2 + $0x30] sm:$0xff]
    %v96 = vld [vmem:[%s2 + $0x38] sm:$0xff]
    %v97 = vld [vmem:[%s2 + $0x40] sm:$0xff]
    %v98 = vld [vmem:[%s2 + $0x48] sm:$0xff]
    %v99 = vld [vmem:[%s2 + $0x50] sm:$0xff]
    %v100 = vld [vmem:[%s2 + $0x58] sm:$0xff]
    %v101 = vld [vmem:[%s2 + $0x60] sm:$0xf]
    %vm102 = vcmask 818176
    %v104 = vsel %vm102, %v87, 0
    %v107 = vsel %vm102, %v88, 0
    %vm109 = vcmask 1043456
    %v111 = vsel %vm109, %v101, 0
    %113 = vmatpush.msra.mxu0 0.0
    %114 = vmatpush.msra.mxu0 0.0
    %115 = vmatpush.msra.mxu0 0.0
    %116 = vmatpush.msra.mxu0 %v111
    %117 = vmatpush.msra.mxu0 %v100
    %118 = vmatpush.msra.mxu0 %v99
    %119 = vmatpush.msra.mxu0 %v98
    %120 = vmatpush.msra.mxu0 %v97
    %121 = vmatpush.msra.mxu0 %v96
    %122 = vmatpush.msra.mxu0 %v95
    %123 = vmatpush.msra.mxu0 %v94
    %124 = vmatpush.msra.mxu0 %v93
    %125 = vmatpush.msra.mxu0 %v92
    %126 = vmatpush.msra.mxu0 %v91
    %127 = vmatpush.msra.mxu0 %v90
    %128 = vmatpush.msra.mxu0 %v89
    %129 = vmatmul.f32.gmra.mxu0 %v104
    %v130 = vpop.f32.mrf.mxu0
    %v131 = vadd.f32 0.0, %v130
    %132 = vmatmul.f32.gmra.mxu0 %v107
    %v133 = vpop.f32.mrf.mxu0
    %v134 = vadd.f32 0.0, %v133
    %135 = vdwg.mxu0
    %vm136 = vcmask 80896
    %v137 = vsel %vm136, %v131, -inf
    %v138 = vrot.slane %v137, 4
    %v139 = vmax.f32 %v137, %v138
    %v140 = vrot.slane %v139, 2
    %v141 = vmax.f32 %v139, %v140
    %v142 = vrot.slane %v141, 1
    %v143 = vmax.f32 %v141, %v142
    %v144 = vsub.f32 %v131, %v143
    %v145 = vmul.f32 %v144, 1.442695
    %v146 = vpow.pop %v145
    %v147 = vsel %vm136, %v146, 0.0
    %v148 = vrot.slane %v147, 4
    %v149 = vadd.f32 %v147, %v148
    %v150 = vrot.slane %v149, 2
    %v151 = vadd.f32 %v149, %v150
    %v152 = vrot.slane %v151, 1
    %v153 = vadd.f32 %v151, %v152
    %v154 = vrcp.pop %v153
    %v155 = vmul.f32 %v153, %v154
    %v156 = vsub.f32 1.0, %v155
    %v157 = vmul.f32 %v154, %v156
    %v158 = vadd.f32 %v154, %v157
    %vm159 = vweird.f32 %v153
    %vm160 = vweird.f32 %v154
    %vm161 = vmor %vm159, %vm160
    %v162 = vsel %vm161, %v154, %v158
    %v163 = vand.u32 2147483647, %v153
    %vm164 = vcmp.eq.f32.partialorder %v163, 8.507059e+37
    %v165 = vand.u32 %v153, 2147483648
    %v166 = vor.u32 1.1754944e-38, %v165
    %v167 = vsel %vm164, %v166, %v162
    %v168 = vmul.f32 %v146, %v167
    %170 = vrot.lane.b32.xlu0 %v168, 10
    %v171 = vpop.permute.xlu0 %170
    %173 = vrot.lane.b32.xlu0 %v168, 20
    %v174 = vpop.permute.xlu0 %173
    %v176 = vsel %vm136, %v168, %v171
    %vm177 = vcmask 162816
    %v178 = vsel %vm177, %v176, %v174
    %181 = vrot.lane.b32.xlu0 %v54, 28
    %v182 = vpop.permute.xlu0 %181
    %183 = vrot.lane.b32.xlu0 %v77, 28
    %v184 = vpop.permute.xlu0 %183
    %vm185 = vcmask 228352
    %v186 = vsel %vm185, %v182, %v184
    %v188 = vmul.f32 %v178, %v186
    %vm189 = vcmask 244736
    %v190 = vsel %vm189, %v188, 0.0
    %v191 = vrot.slane %v190, 4
    %v192 = vadd.f32 %v190, %v191
    %v193 = vrot.slane %v192, 2
    %v194 = vadd.f32 %v192, %v193
    %v195 = vrot.slane %v194, 1
    %v196 = vadd.f32 %v194, %v195
    %v197 = vsel %vm136, %v134, -inf
    %v198 = vrot.slane %v197, 4
    %v199 = vmax.f32 %v197, %v198
    %v200 = vrot.slane %v199, 2
    %v201 = vmax.f32 %v199, %v200
    %v202 = vrot.slane %v201, 1
    %v203 = vmax.f32 %v201, %v202
    %v204 = vsub.f32 %v134, %v203
    %v205 = vmul.f32 %v204, 1.442695
    %v206 = vpow.pop %v205
    %v207 = vsel %vm136, %v206, 0.0
    %v208 = vrot.slane %v207, 4
    %v209 = vadd.f32 %v207, %v208
    %v210 = vrot.slane %v209, 2
    %v211 = vadd.f32 %v209, %v210
    %v212 = vrot.slane %v211, 1
    %v213 = vadd.f32 %v211, %v212
    %v214 = vrcp.pop %v213
    %v215 = vmul.f32 %v213, %v214
    %v216 = vsub.f32 1.0, %v215
    %v217 = vmul.f32 %v214, %v216
    %v218 = vadd.f32 %v214, %v217
    %vm219 = vweird.f32 %v213
    %vm220 = vweird.f32 %v214
    %vm221 = vmor %vm219, %vm220
    %v222 = vsel %vm221, %v214, %v218
    %v223 = vand.u32 2147483647, %v213
    %vm224 = vcmp.eq.f32.partialorder %v223, 8.507059e+37
    %v225 = vand.u32 %v213, 2147483648
    %v226 = vor.u32 1.1754944e-38, %v225
    %v227 = vsel %vm224, %v226, %v222
    %v228 = vmul.f32 %v206, %v227
    %230 = vrot.lane.b32.xlu0 %v228, 10
    %v231 = vpop.permute.xlu0 %230
    %233 = vrot.lane.b32.xlu0 %v228, 20
    %v234 = vpop.permute.xlu0 %233
    %v236 = vsel %vm136, %v228, %v231
    %v237 = vsel %vm177, %v236, %v234
    %240 = vrot.lane.b32.xlu0 %v57, 28
    %v241 = vpop.permute.xlu0 %240
    %242 = vrot.lane.b32.xlu0 %v80, 28
    %v243 = vpop.permute.xlu0 %242
    %v244 = vsel %vm185, %v241, %v243
    %v246 = vmul.f32 %v237, %v244
    %v247 = vsel %vm189, %v246, 0.0
    %v248 = vrot.slane %v247, 4
    %v249 = vadd.f32 %v247, %v248
    %v250 = vrot.slane %v249, 2
    %v251 = vadd.f32 %v249, %v250
    %v252 = vrot.slane %v251, 1
    %v253 = vadd.f32 %v251, %v252
    %vm254 = vcmask 1040384
    %v255 = vsel %vm254, %v196, %v253
    %vm256 = vcmask 74752
    %v257 = vsel %vm256, %v255, 0.0
    %258 = vadd.xlane.f32.xlu0 %v257
    %v259 = vpop.xlane.xlu0 %258
    %261 = vrot.lane.b32.xlu0 %v255, 118
    %v262 = vpop.permute.xlu0 %261
    %v264 = vsel %vm256, %v262, 0.0
    %265 = vadd.xlane.f32.xlu0 %v264
    %v266 = vpop.xlane.xlu0 %265
    %267 = vrot.lane.b32.xlu0 %v255, 108
    %v268 = vpop.permute.xlu0 %267
    %v270 = vsel %vm256, %v268, 0.0
    %271 = vadd.xlane.f32.xlu0 %v270
    %v272 = vpop.xlane.xlu0 %271
    %vm273 = vcmask 7168
    %v274 = vsel %vm273, %v259, %v266
    %vm275 = vcmask 15360
    %v276 = vsel %vm275, %v274, %v272
    %277 = vrot.lane.b32.xlu0 %v83, 28
    %v278 = vpop.permute.xlu0 %277
    %v280 = vadd.f32 %v276, %v278
    %vm281 = vcmask 17408
    %282 = vst.msk [vmem:[#allocation2] sm:$0x3] %vm281, %v280
    // Predicated region
    $region18: #{tpu_custom_call.1} parent=1 // pred_check
      _
    $region19: #{tpu_custom_call.1} parent=1 // pred_check_branch
      %284 = sbr.rel (0) target = $region21
    $region20: #{tpu_custom_call.1} parent=1 // pred_region
      %286 = vsyncadd [#allocation3], 0
      %s288 = sshll.u32 [#allocation2], 4
      %s289 = int_to_ptr.vmem [resolvable:$true] %s288
      %s290 = sshll.u32 %s4, 4
      %s291 = int_to_ptr.hbm [resolvable:$true] %s290
      %293 = dma.vmem_to_hbm [thread:$0]  %s289, 32, %s291, [#allocation3]
    $region21: #{tpu_custom_call.1} parent=1 // pred_fallthru
      _
    // Predicated region
    $region22: #{tpu_custom_call.1} parent=1 // pred_check
      _
    $region23: #{tpu_custom_call.1} parent=1 // pred_check_branch
      %295 = sbr.rel (0) target = $region25
    $region24: #{tpu_custom_call.1} parent=1 // pred_region
      %297 = dma.done [#allocation3], 32
    $region25: #{tpu_custom_call.1} parent=1 // pred_fallthru
      _
    %298 = vsyncpa [#allocation3], 1

</llo_original>
